<compile_context>
chip_gen: v5e
topology: v5e:2x2
jax: 0.10.0
libtpu: 0.0.40
codegen_flags: <defaults>
</compile_context>

<pallas_src>
import jax
import jax.numpy as jnp
from jax.experimental import pallas as pl
from jax.experimental.pallas import tpu as pltpu  # noqa: F401  (TPU backend assumed)

# ---- model config (small, consistent with the module) ----
N = 2              # batch
L = 8              # sequence length
E = 32             # embed_size
HEADS = 4
HEAD_DIM = E // HEADS
EXPANSION = 2
F = E * EXPANSION
EPS = 1e-5

NL = N * L         # rows after folding batch into the row dimension
HL = HEADS * NL    # rows of the head-stacked score matrix
W = 3 * E          # lane width of the constant slab (96)

# ---- constant-slab row offsets (all static, multiples of 8) ----
R_WQKV = 0                 # (3E, 3E) block-diagonal fused Q/K/V projection
R_WO = R_WQKV + 3 * E      # (E, E)   Wo.T
R_W1 = R_WO + E            # (E, F)   W1.T
R_W2 = R_W1 + E            # (F, E)   W2.T
R_HM = R_W2 + F            # (HL, E)  head lane mask
R_BM = R_HM + HL           # (HL, NL) additive cross-batch mask (0 / -1e30)
R_VEC = R_BM + HL          # (8, W)   packed bias / LN vectors
SLAB_ROWS = R_VEC + 8      # 360


def _layer_norm(x, gamma, beta):
    mu = jnp.mean(x, axis=-1, keepdims=True)
    xc = x - mu
    var = jnp.mean(xc * xc, axis=-1, keepdims=True)
    return xc * jax.lax.rsqrt(var + EPS) * gamma + beta


def transformer_block_kernel(qkv_ref, c_ref, o_ref):
    # ---- operands: 2 input DMAs total (qkv activations + constant slab) ----
    qkv = qkv_ref[...]                               # (NL, 3E) lane-packed q|k|v
    q_in = qkv[:, 0:E]                               # residual input

    wqkv = c_ref[R_WQKV:R_WQKV + 3 * E, :]           # (3E, 3E) blockdiag(Wq*s, Wk, Wv)
    wo_t = c_ref[R_WO:R_WO + E, 0:E]                 # (E, E)
    w1t = c_ref[R_W1:R_W1 + E, 0:F]                  # (E, F)
    w2t = c_ref[R_W2:R_W2 + F, 0:E]                  # (F, E)
    head_mask = c_ref[R_HM:R_HM + HL, 0:E]           # (HL, E)
    bmask = c_ref[R_BM:R_BM + HL, 0:NL]              # (HL, NL) additive
    vecs = c_ref[R_VEC:R_VEC + 8, :]                 # (8, W) packed small vectors
    bo = vecs[0:1, 0:E]
    g1 = vecs[1:2, 0:E]
    be1 = vecs[2:3, 0:E]
    b1 = vecs[3:4, 0:F]
    b2 = vecs[4:5, 0:E]
    g2 = vecs[5:6, 0:E]
    be2 = vecs[6:7, 0:E]

    # ---- fused Q/K/V projection: ONE (NL,3E)x(3E,3E) MXU matmul ----
    qkvp = jnp.dot(qkv, wqkv, preferred_element_type=jnp.float32)   # (NL, 3E)
    qp = qkvp[:, 0:E]          # 1/sqrt(E) softmax scale pre-folded into Wq
    kp = qkvp[:, E:2 * E]
    vp = qkvp[:, 2 * E:3 * E]

    # ---- multi-head attention via head-stacked rows + precomputed lane masks ----
    q_stack = jnp.concatenate([qp] * HEADS, axis=0) * head_mask      # (HL, E)

    # scores[h*NL + i, j] = <qp[i] restricted to head h, kp[j]>  (already scaled)
    scores = jax.lax.dot_general(
        q_stack, kp, (((1,), (1,)), ((), ())),
        preferred_element_type=jnp.float32)                          # (HL, NL)
    scores = scores + bmask        # forbid attention across batch elements

    m = jnp.max(scores, axis=-1, keepdims=True)
    p = jnp.exp(scores - m)
    p = p / jnp.sum(p, axis=-1, keepdims=True)                       # exact divide

    # per-head output lands in disjoint lane blocks -> summing row blocks == concat
    o_all = jnp.dot(p, vp, preferred_element_type=jnp.float32) * head_mask  # (HL, E)
    attn = (o_all[0:NL] + o_all[NL:2 * NL]
            + o_all[2 * NL:3 * NL] + o_all[3 * NL:4 * NL])           # (NL, E)

    attn = jnp.dot(attn, wo_t, preferred_element_type=jnp.float32) + bo

    # ---- residual + LN1, feed-forward, residual + LN2 ----
    x1 = _layer_norm(attn + q_in, g1, be1)
    h = jnp.maximum(jnp.dot(x1, w1t, preferred_element_type=jnp.float32) + b1, 0.0)
    x2 = jnp.dot(h, w2t, preferred_element_type=jnp.float32) + b2
    out = _layer_norm(x2 + x1, g2, be2)
    # TODO(synk): dropout treated as identity (inference mode); training-mode
    # stochastic dropout is not reproduced here.
    o_ref[...] = out.astype(o_ref.dtype)


def pack_params(params):
    """Pure function of the weights; call ONCE and reuse across forward calls."""
    scale = 1.0 / (float(E) ** 0.5)   # module divides energy by sqrt(embed_size) (per spec)
    eye_h = jnp.eye(HEADS, dtype=jnp.float32)
    wq_bd = jnp.kron(eye_h, params["wq"].T) * scale   # scale folded into Wq
    wk_bd = jnp.kron(eye_h, params["wk"].T)
    wv_bd = jnp.kron(eye_h, params["wv"].T)
    Z = jnp.zeros((E, E), jnp.float32)
    wqkv = jnp.block([[wq_bd, Z, Z], [Z, wk_bd, Z], [Z, Z, wv_bd]])  # (3E, 3E)

    # compile-time-static masks, shipped as data instead of regenerated per call
    row_head = jnp.arange(HL)[:, None] // NL
    col_head = jnp.arange(E)[None, :] // HEAD_DIM
    head_mask = (row_head == col_head).astype(jnp.float32)           # (HL, E)
    q_batch = (jnp.arange(HL)[:, None] % NL) // L
    k_batch = jnp.arange(NL)[None, :] // L
    bmask = jnp.where(q_batch == k_batch, 0.0, -1e30).astype(jnp.float32)  # (HL, NL)

    def padw(x):
        return jnp.pad(x, ((0, 0), (0, W - x.shape[1])))

    def vrow(x):
        return padw(x.reshape(1, -1).astype(jnp.float32))

    vecs = jnp.concatenate([
        vrow(params["bo"]), vrow(params["g1"]), vrow(params["be1"]),
        vrow(params["b1"]), vrow(params["b2"]), vrow(params["g2"]),
        vrow(params["be2"]), jnp.zeros((1, W), jnp.float32),
    ], axis=0)                                                        # (8, W)

    slab = jnp.concatenate([
        wqkv,                        # (96, 96)
        padw(params["wo"].T),        # (32, 96)
        padw(params["w1"].T),        # (32, 96)
        padw(params["w2"].T),        # (64, 96)
        padw(head_mask),             # (64, 96)
        padw(bmask),                 # (64, 96)
        vecs,                        # (8,  96)
    ], axis=0)
    assert slab.shape == (SLAB_ROWS, W)
    return slab


@jax.jit
def transformer_block(q, k, v, slab):
    n, seq, emb = q.shape
    # lane-pack q|k|v -> (NL, 3E): cheap last-axis concat, feeds the fused matmul
    qkv = jnp.concatenate([q.reshape(n * seq, emb),
                           k.reshape(n * seq, emb),
                           v.reshape(n * seq, emb)], axis=-1)

    # Single gridless kernel invocation: whole (tiny) problem resident in VMEM;
    # 2 input DMAs + 1 output DMA total.
    out = pl.pallas_call(
        transformer_block_kernel,
        out_shape=jax.ShapeDtypeStruct((n * seq, emb), jnp.float32),
    )(qkv, slab)

    return out.reshape(n, seq, emb)


# ---------------- pure-JAX reference (for verification) ----------------
def reference(q, k, v, p):
    n, seq, emb = q.shape
    qh = q.reshape(n, seq, HEADS, HEAD_DIM)
    kh = k.reshape(n, seq, HEADS, HEAD_DIM)
    vh = v.reshape(n, seq, HEADS, HEAD_DIM)
    qp = jnp.einsum("nlhd,od->nlho", qh, p["wq"])
    kp = jnp.einsum("nlhd,od->nlho", kh, p["wk"])
    vp = jnp.einsum("nlhd,od->nlho", vh, p["wv"])
    energy = jnp.einsum("nqhd,nkhd->nhqk", qp, kp) / (emb ** 0.5)
    attn = jax.nn.softmax(energy, axis=3)
    out = jnp.einsum("nhqk,nkhd->nqhd", attn, vp).reshape(n, seq, emb)
    out = out @ p["wo"].T + p["bo"]

    def ln(x, g, b):
        mu = jnp.mean(x, axis=-1, keepdims=True)
        var = jnp.mean((x - mu) ** 2, axis=-1, keepdims=True)
        return (x - mu) / jnp.sqrt(var + EPS) * g + b

    x1 = ln(out + q, p["g1"], p["be1"])
    h = jax.nn.relu(x1 @ p["w1"].T + p["b1"])
    x2 = h @ p["w2"].T + p["b2"]
    return ln(x2 + x1, p["g2"], p["be2"])


def init_params(key):
    ks = jax.random.split(key, 12)
    s = 0.1
    return {
        "wq": jax.random.normal(ks[0], (HEAD_DIM, HEAD_DIM), jnp.float32) * s,
        "wk": jax.random.normal(ks[1], (HEAD_DIM, HEAD_DIM), jnp.float32) * s,
        "wv": jax.random.normal(ks[2], (HEAD_DIM, HEAD_DIM), jnp.float32) * s,
        "wo": jax.random.normal(ks[3], (E, E), jnp.float32) * s,
        "bo": jax.random.normal(ks[4], (E,), jnp.float32) * s,
        "g1": jnp.ones((E,), jnp.float32),
        "be1": jnp.zeros((E,), jnp.float32),
        "w1": jax.random.normal(ks[5], (F, E), jnp.float32) * s,
        "b1": jax.random.normal(ks[6], (F,), jnp.float32) * s,
        "w2": jax.random.normal(ks[7], (E, F), jnp.float32) * s,
        "b2": jax.random.normal(ks[8], (E,), jnp.float32) * s,
        "g2": jnp.ones((E,), jnp.float32),
        "be2": jnp.zeros((E,), jnp.float32),
    }


if __name__ == "__main__":
    key = jax.random.PRNGKey(0)
    kq, kk, kv, kp = jax.random.split(key, 4)
    q = jax.random.normal(kq, (N, L, E), jnp.float32)
    k = jax.random.normal(kk, (N, L, E), jnp.float32)
    v = jax.random.normal(kv, (N, L, E), jnp.float32)
    params = init_params(kp)

    # constant packing hoisted out of the per-call hot path (done once)
    slab = jax.block_until_ready(pack_params(params))

    out = transformer_block(q, k, v, slab)
    out = jax.block_until_ready(out)

    ref = reference(q, k, v, params)
    assert out.shape == (N, L, E)
    assert bool(jnp.allclose(out, ref, atol=1e-4, rtol=1e-4)), "mismatch vs reference"
    print("KERNEL_OK")
</pallas_src>

<mosaic_0001>
module attributes {stable_mosaic.version = 11 : i64} {
  func.func @transformer_block_kernel(%arg0: memref<16x96xf32, #tpu.memory_space<vmem>>, %arg1: memref<360x96xf32, #tpu.memory_space<vmem>>, %arg2: memref<16x32xf32, #tpu.memory_space<vmem>>) attributes {dimension_semantics = [], scalar_prefetch = 0 : i64, scratch_operands = 0 : i64, tpu.core_type = #tpu.core_type<tc>} {
    %c0 = arith.constant 0 : index
    %c0_0 = arith.constant 0 : index
    %0 = vector.load %arg0[%c0, %c0_0] : memref<16x96xf32, #tpu.memory_space<vmem>>, vector<16x96xf32>
    %1 = vector.extract_strided_slice %0 {offsets = [0, 0], sizes = [16, 32], strides = [1, 1]} : vector<16x96xf32> to vector<16x32xf32>
    %c0_1 = arith.constant 0 : index
    %c0_2 = arith.constant 0 : index
    %2 = vector.load %arg1[%c0_1, %c0_2] : memref<360x96xf32, #tpu.memory_space<vmem>>, vector<96x96xf32>
    %c96 = arith.constant 96 : index
    %c0_3 = arith.constant 0 : index
    %3 = vector.load %arg1[%c96, %c0_3] : memref<360x96xf32, #tpu.memory_space<vmem>>, vector<32x32xf32>
    %c128 = arith.constant 128 : index
    %c0_4 = arith.constant 0 : index
    %4 = vector.load %arg1[%c128, %c0_4] : memref<360x96xf32, #tpu.memory_space<vmem>>, vector<32x64xf32>
    %c160 = arith.constant 160 : index
    %c0_5 = arith.constant 0 : index
    %5 = vector.load %arg1[%c160, %c0_5] : memref<360x96xf32, #tpu.memory_space<vmem>>, vector<64x32xf32>
    %c224 = arith.constant 224 : index
    %c0_6 = arith.constant 0 : index
    %6 = vector.load %arg1[%c224, %c0_6] : memref<360x96xf32, #tpu.memory_space<vmem>>, vector<64x32xf32>
    %c288 = arith.constant 288 : index
    %c0_7 = arith.constant 0 : index
    %7 = vector.load %arg1[%c288, %c0_7] : memref<360x96xf32, #tpu.memory_space<vmem>>, vector<64x16xf32>
    %c352 = arith.constant 352 : index
    %c0_8 = arith.constant 0 : index
    %8 = vector.load %arg1[%c352, %c0_8] : memref<360x96xf32, #tpu.memory_space<vmem>>, vector<8x96xf32>
    %9 = vector.extract_strided_slice %8 {offsets = [0, 0], sizes = [1, 32], strides = [1, 1]} : vector<8x96xf32> to vector<1x32xf32>
    %10 = vector.extract_strided_slice %8 {offsets = [1, 0], sizes = [1, 32], strides = [1, 1]} : vector<8x96xf32> to vector<1x32xf32>
    %11 = vector.extract_strided_slice %8 {offsets = [2, 0], sizes = [1, 32], strides = [1, 1]} : vector<8x96xf32> to vector<1x32xf32>
    %12 = vector.extract_strided_slice %8 {offsets = [3, 0], sizes = [1, 64], strides = [1, 1]} : vector<8x96xf32> to vector<1x64xf32>
    %13 = vector.extract_strided_slice %8 {offsets = [4, 0], sizes = [1, 32], strides = [1, 1]} : vector<8x96xf32> to vector<1x32xf32>
    %14 = vector.extract_strided_slice %8 {offsets = [5, 0], sizes = [1, 32], strides = [1, 1]} : vector<8x96xf32> to vector<1x32xf32>
    %15 = vector.extract_strided_slice %8 {offsets = [6, 0], sizes = [1, 32], strides = [1, 1]} : vector<8x96xf32> to vector<1x32xf32>
    %cst = arith.constant dense<0.000000e+00> : vector<16x96xf32>
    %16 = tpu.matmul %0, %2, %cst {dimension_numbers = #tpu.dot_dimension_numbers<[1], [0], [0], [1], [0, 0, 1, 1], [], []>} : vector<16x96xf32>, vector<96x96xf32>, vector<16x96xf32> -> vector<16x96xf32>
    %17 = vector.extract_strided_slice %16 {offsets = [0, 0], sizes = [16, 32], strides = [1, 1]} : vector<16x96xf32> to vector<16x32xf32>
    %18 = vector.extract_strided_slice %16 {offsets = [0, 32], sizes = [16, 32], strides = [1, 1]} : vector<16x96xf32> to vector<16x32xf32>
    %19 = vector.extract_strided_slice %16 {offsets = [0, 64], sizes = [16, 32], strides = [1, 1]} : vector<16x96xf32> to vector<16x32xf32>
    %20 = tpu.concatenate %17, %17, %17, %17 in 0 : vector<16x32xf32>, vector<16x32xf32>, vector<16x32xf32>, vector<16x32xf32> -> vector<64x32xf32>
    %21 = arith.mulf %20, %6 : vector<64x32xf32>
    %cst_9 = arith.constant dense<0.000000e+00> : vector<64x16xf32>
    %22 = tpu.matmul %21, %18, %cst_9 {dimension_numbers = #tpu.dot_dimension_numbers<[1], [1], [0], [0], [0, 0, 1, 0], [], []>} : vector<64x32xf32>, vector<16x32xf32>, vector<64x16xf32> -> vector<64x16xf32>
    %23 = arith.addf %22, %7 : vector<64x16xf32>
    %cst_10 = arith.constant dense<0xFF800000> : vector<64xf32>
    %24 = vector.multi_reduction <maximumf>, %23, %cst_10 [1] : vector<64x16xf32> to vector<64xf32>
    %25 = vector.shape_cast %24 : vector<64xf32> to vector<64x1xf32>
    %26 = vector.broadcast %25 : vector<64x1xf32> to vector<64x16xf32>
    %27 = arith.subf %23, %26 : vector<64x16xf32>
    %28 = math.exp %27 : vector<64x16xf32>
    %cst_11 = arith.constant dense<0.000000e+00> : vector<64xf32>
    %29 = vector.multi_reduction <add>, %28, %cst_11 [1] : vector<64x16xf32> to vector<64xf32>
    %30 = vector.shape_cast %29 : vector<64xf32> to vector<64x1xf32>
    %31 = vector.broadcast %30 : vector<64x1xf32> to vector<64x16xf32>
    %32 = arith.divf %28, %31 : vector<64x16xf32>
    %cst_12 = arith.constant dense<0.000000e+00> : vector<64x32xf32>
    %33 = tpu.matmul %32, %19, %cst_12 {dimension_numbers = #tpu.dot_dimension_numbers<[1], [0], [0], [1], [0, 0, 1, 1], [], []>} : vector<64x16xf32>, vector<16x32xf32>, vector<64x32xf32> -> vector<64x32xf32>
    %34 = arith.mulf %33, %6 : vector<64x32xf32>
    %35 = vector.extract_strided_slice %34 {offsets = [0, 0], sizes = [16, 32], strides = [1, 1]} : vector<64x32xf32> to vector<16x32xf32>
    %36 = vector.extract_strided_slice %34 {offsets = [16, 0], sizes = [16, 32], strides = [1, 1]} : vector<64x32xf32> to vector<16x32xf32>
    %37 = arith.addf %35, %36 : vector<16x32xf32>
    %38 = vector.extract_strided_slice %34 {offsets = [32, 0], sizes = [16, 32], strides = [1, 1]} : vector<64x32xf32> to vector<16x32xf32>
    %39 = arith.addf %37, %38 : vector<16x32xf32>
    %40 = vector.extract_strided_slice %34 {offsets = [48, 0], sizes = [16, 32], strides = [1, 1]} : vector<64x32xf32> to vector<16x32xf32>
    %41 = arith.addf %39, %40 : vector<16x32xf32>
    %cst_13 = arith.constant dense<0.000000e+00> : vector<16x32xf32>
    %42 = tpu.matmul %41, %3, %cst_13 {dimension_numbers = #tpu.dot_dimension_numbers<[1], [0], [0], [1], [0, 0, 1, 1], [], []>} : vector<16x32xf32>, vector<32x32xf32>, vector<16x32xf32> -> vector<16x32xf32>
    %43 = vector.broadcast %9 : vector<1x32xf32> to vector<16x32xf32>
    %44 = arith.addf %42, %43 : vector<16x32xf32>
    %45 = arith.addf %44, %1 : vector<16x32xf32>
    %cst_14 = arith.constant dense<0.000000e+00> : vector<16xf32>
    %46 = vector.multi_reduction <add>, %45, %cst_14 [1] : vector<16x32xf32> to vector<16xf32>
    %47 = vector.shape_cast %46 : vector<16xf32> to vector<16x1xf32>
    %cst_15 = arith.constant 3.200000e+01 : f32
    %48 = vector.broadcast %cst_15 : f32 to vector<16x1xf32>
    %49 = arith.divf %47, %48 : vector<16x1xf32>
    %50 = vector.broadcast %49 : vector<16x1xf32> to vector<16x32xf32>
    %51 = arith.subf %45, %50 : vector<16x32xf32>
    %52 = arith.mulf %51, %51 : vector<16x32xf32>
    %cst_16 = arith.constant dense<0.000000e+00> : vector<16xf32>
    %53 = vector.multi_reduction <add>, %52, %cst_16 [1] : vector<16x32xf32> to vector<16xf32>
    %54 = vector.shape_cast %53 : vector<16xf32> to vector<16x1xf32>
    %cst_17 = arith.constant 3.200000e+01 : f32
    %55 = vector.broadcast %cst_17 : f32 to vector<16x1xf32>
    %56 = arith.divf %54, %55 : vector<16x1xf32>
    %cst_18 = arith.constant 9.99999974E-6 : f32
    %57 = vector.broadcast %cst_18 : f32 to vector<16x1xf32>
    %58 = arith.addf %56, %57 : vector<16x1xf32>
    %59 = math.rsqrt %58 : vector<16x1xf32>
    %60 = vector.broadcast %59 : vector<16x1xf32> to vector<16x32xf32>
    %61 = arith.mulf %51, %60 : vector<16x32xf32>
    %62 = vector.broadcast %10 : vector<1x32xf32> to vector<16x32xf32>
    %63 = arith.mulf %61, %62 : vector<16x32xf32>
    %64 = vector.broadcast %11 : vector<1x32xf32> to vector<16x32xf32>
    %65 = arith.addf %63, %64 : vector<16x32xf32>
    %cst_19 = arith.constant dense<0.000000e+00> : vector<16x64xf32>
    %66 = tpu.matmul %65, %4, %cst_19 {dimension_numbers = #tpu.dot_dimension_numbers<[1], [0], [0], [1], [0, 0, 1, 1], [], []>} : vector<16x32xf32>, vector<32x64xf32>, vector<16x64xf32> -> vector<16x64xf32>
    %67 = vector.broadcast %12 : vector<1x64xf32> to vector<16x64xf32>
    %68 = arith.addf %66, %67 : vector<16x64xf32>
    %cst_20 = arith.constant 0.000000e+00 : f32
    %69 = vector.broadcast %cst_20 : f32 to vector<16x64xf32>
    %70 = arith.maximumf %68, %69 : vector<16x64xf32>
    %cst_21 = arith.constant dense<0.000000e+00> : vector<16x32xf32>
    %71 = tpu.matmul %70, %5, %cst_21 {dimension_numbers = #tpu.dot_dimension_numbers<[1], [0], [0], [1], [0, 0, 1, 1], [], []>} : vector<16x64xf32>, vector<64x32xf32>, vector<16x32xf32> -> vector<16x32xf32>
    %72 = vector.broadcast %13 : vector<1x32xf32> to vector<16x32xf32>
    %73 = arith.addf %71, %72 : vector<16x32xf32>
    %74 = arith.addf %73, %65 : vector<16x32xf32>
    %cst_22 = arith.constant dense<0.000000e+00> : vector<16xf32>
    %75 = vector.multi_reduction <add>, %74, %cst_22 [1] : vector<16x32xf32> to vector<16xf32>
    %76 = vector.shape_cast %75 : vector<16xf32> to vector<16x1xf32>
    %cst_23 = arith.constant 3.200000e+01 : f32
    %77 = vector.broadcast %cst_23 : f32 to vector<16x1xf32>
    %78 = arith.divf %76, %77 : vector<16x1xf32>
    %79 = vector.broadcast %78 : vector<16x1xf32> to vector<16x32xf32>
    %80 = arith.subf %74, %79 : vector<16x32xf32>
    %81 = arith.mulf %80, %80 : vector<16x32xf32>
    %cst_24 = arith.constant dense<0.000000e+00> : vector<16xf32>
    %82 = vector.multi_reduction <add>, %81, %cst_24 [1] : vector<16x32xf32> to vector<16xf32>
    %83 = vector.shape_cast %82 : vector<16xf32> to vector<16x1xf32>
    %cst_25 = arith.constant 3.200000e+01 : f32
    %84 = vector.broadcast %cst_25 : f32 to vector<16x1xf32>
    %85 = arith.divf %83, %84 : vector<16x1xf32>
    %cst_26 = arith.constant 9.99999974E-6 : f32
    %86 = vector.broadcast %cst_26 : f32 to vector<16x1xf32>
    %87 = arith.addf %85, %86 : vector<16x1xf32>
    %88 = math.rsqrt %87 : vector<16x1xf32>
    %89 = vector.broadcast %88 : vector<16x1xf32> to vector<16x32xf32>
    %90 = arith.mulf %80, %89 : vector<16x32xf32>
    %91 = vector.broadcast %14 : vector<1x32xf32> to vector<16x32xf32>
    %92 = arith.mulf %90, %91 : vector<16x32xf32>
    %93 = vector.broadcast %15 : vector<1x32xf32> to vector<16x32xf32>
    %94 = arith.addf %92, %93 : vector<16x32xf32>
    %c0_27 = arith.constant 0 : index
    %c0_28 = arith.constant 0 : index
    %95 = vector.load %arg2[%c0_27, %c0_28] : memref<16x32xf32, #tpu.memory_space<vmem>>, vector<16x32xf32>
    tpu.vector_store %arg2[%c0_27, %c0_28], %94 {strides = array<i32>} : memref<16x32xf32, #tpu.memory_space<vmem>>, vector<16x32xf32>,
    return
  }
}

</mosaic_0001>

<llo_original>
// kernel: transformer_block.1
$region0: #{transformer_block.1}
  #allocation0 [shape = 'u32[]', space=smem, size = 0x4, offset = 0x4, fixed_abs, tag = 'smem constant byte address 0x4 - core index']
  #allocation1 [shape = 'u32[72,128]{1,0:T(1,128)}', space=vmem, size = 0x9000, scoped, tag = 'internal scratch']
  %s0 = inlined_call_operand.vmem [shape: f32[16,96], index: 0, kind: input, shape index: {}]
  %s1 = inlined_call_operand.vmem [shape: f32[360,96], index: 1, kind: input, shape index: {}]
  %s2 = inlined_call_operand.hbm [shape: f32[16,32], index: 2, kind: output, shape index: {}]
  %s3 = sld [smem:[#allocation0]]
  $region18: #{transformer_block.1} parent=0
    _
  %s5 = ssub.s32 1, %s3
  %s6 = scalar_select 0, %s5, %s3
  $region1: #{transformer_block.1} parent=0
    #allocation2 [shape = 'u8[8192]{0}', space=vmem, size = 0x2000, scoped, tag = 'output window, operand 0, single buffered']
    #allocation3 [shape = 's32[1]{0}', space=sflag, size = 0x4, scoped, tag = 'scoped memory for transformer_block.1']
    %7 = vsyncpa [#allocation3], 0
    // Predicated region
    $region2: #{transformer_block.1} parent=1 // pred_check
      _
    $region3: #{transformer_block.1} parent=1 // pred_check_branch
      %9 = sbr.rel (0) target = $region5
    $region4: #{transformer_block.1} parent=1 // pred_region
      _
    $region5: #{transformer_block.1} parent=1 // pred_fallthru
      _
    // Predicated region
    $region6: #{transformer_block.1} parent=1 // pred_check
      _
    $region7: #{transformer_block.1} parent=1 // pred_check_branch
      %11 = sbr.rel (0) target = $region9
    $region8: #{transformer_block.1} parent=1 // pred_region
      _
    $region9: #{transformer_block.1} parent=1 // pred_fallthru
      _
    %v12 = vld [vmem:[%s0] sm:$0xff]
    %v13 = vld [vmem:[%s0 + $0x8] sm:$0xff]
    %v14 = vld [vmem:[%s1] sm:$0xff]
    %v15 = vld [vmem:[%s1 + $0x8] sm:$0xff]
    %v16 = vld [vmem:[%s1 + $0x10] sm:$0xff]
    %v17 = vld [vmem:[%s1 + $0x18] sm:$0xff]
    %v18 = vld [vmem:[%s1 + $0x20] sm:$0xff]
    %v19 = vld [vmem:[%s1 + $0x28] sm:$0xff]
    %v20 = vld [vmem:[%s1 + $0x30] sm:$0xff]
    %v21 = vld [vmem:[%s1 + $0x38] sm:$0xff]
    %v22 = vld [vmem:[%s1 + $0x40] sm:$0xff]
    %v23 = vld [vmem:[%s1 + $0x48] sm:$0xff]
    %v24 = vld [vmem:[%s1 + $0x50] sm:$0xff]
    %v25 = vld [vmem:[%s1 + $0x58] sm:$0xff]
    %v26 = vld [vmem:[%s1 + $0x60] sm:$0xff]
    %v27 = vld [vmem:[%s1 + $0x68] sm:$0xff]
    %v28 = vld [vmem:[%s1 + $0x70] sm:$0xff]
    %v29 = vld [vmem:[%s1 + $0x78] sm:$0xff]
    %v30 = vld [vmem:[%s1 + $0x80] sm:$0xff]
    %v31 = vld [vmem:[%s1 + $0x88] sm:$0xff]
    %v32 = vld [vmem:[%s1 + $0x90] sm:$0xff]
    %v33 = vld [vmem:[%s1 + $0x98] sm:$0xff]
    %v34 = vld [vmem:[%s1 + $0xa0] sm:$0xff]
    %v35 = vld [vmem:[%s1 + $0xa8] sm:$0xff]
    %v36 = vld [vmem:[%s1 + $0xb0] sm:$0xff]
    %v37 = vld [vmem:[%s1 + $0xb8] sm:$0xff]
    %v38 = vld [vmem:[%s1 + $0xc0] sm:$0xff]
    %v39 = vld [vmem:[%s1 + $0xc8] sm:$0xff]
    %v40 = vld [vmem:[%s1 + $0xd0] sm:$0xff]
    %v41 = vld [vmem:[%s1 + $0xd8] sm:$0xff]
    %v42 = vld [vmem:[%s1 + $0xe0] sm:$0xff]
    %v43 = vld [vmem:[%s1 + $0xe8] sm:$0xff]
    %v44 = vld [vmem:[%s1 + $0xf0] sm:$0xff]
    %v45 = vld [vmem:[%s1 + $0xf8] sm:$0xff]
    %v46 = vld [vmem:[%s1 + $0x100] sm:$0xff]
    %v47 = vld [vmem:[%s1 + $0x108] sm:$0xff]
    %v48 = vld [vmem:[%s1 + $0x110] sm:$0xff]
    %v49 = vld [vmem:[%s1 + $0x118] sm:$0xff]
    %v50 = vld [vmem:[%s1 + $0x120] sm:$0xff]
    %v51 = vld [vmem:[%s1 + $0x128] sm:$0xff]
    %v52 = vld [vmem:[%s1 + $0x130] sm:$0xff]
    %v53 = vld [vmem:[%s1 + $0x138] sm:$0xff]
    %v54 = vld [vmem:[%s1 + $0x140] sm:$0xff]
    %v55 = vld [vmem:[%s1 + $0x148] sm:$0xff]
    %v56 = vld [vmem:[%s1 + $0x150] sm:$0xff]
    %v57 = vld [vmem:[%s1 + $0x158] sm:$0xff]
    %v58 = vld [vmem:[%s1 + $0x160] sm:$0xff]
    %vm59 = vcmask 785408
    %v61 = vsel %vm59, %v12, 0
    %v64 = vsel %vm59, %v13, 0
    %66 = vmatpush.msra.mxu0 0.0
    %67 = vmatpush.msra.mxu0 0.0
    %68 = vmatpush.msra.mxu0 0.0
    %69 = vmatpush.msra.mxu0 0.0
    %70 = vmatpush.msra.mxu0 %v25
    %71 = vmatpush.msra.mxu0 %v24
    %72 = vmatpush.msra.mxu0 %v23
    %73 = vmatpush.msra.mxu0 %v22
    %74 = vmatpush.msra.mxu0 %v21
    %75 = vmatpush.msra.mxu0 %v20
    %76 = vmatpush.msra.mxu0 %v19
    %77 = vmatpush.msra.mxu0 %v18
    %78 = vmatpush.msra.mxu0 %v17
    %79 = vmatpush.msra.mxu0 %v16
    %80 = vmatpush.msra.mxu0 %v15
    %81 = vmatpush.msra.mxu0 %v14
    %82 = vmatmul.f32.gmra.mxu0 %v61
    %v83 = vpop.f32.mrf.mxu0
    %v84 = vadd.f32 0.0, %v83
    %85 = vmatmul.f32.gmra.mxu0 %v64
    %v86 = vpop.f32.mrf.mxu0
    %v87 = vadd.f32 0.0, %v86
    %88 = vdwg.mxu0
    %v89 = vmul.f32 %v84, %v42
    %v90 = vmul.f32 %v87, %v43
    %v91 = vmul.f32 %v84, %v44
    %v92 = vmul.f32 %v87, %v45
    %v93 = vmul.f32 %v84, %v46
    %v94 = vmul.f32 %v87, %v47
    %v95 = vmul.f32 %v84, %v48
    %v96 = vmul.f32 %v87, %v49
    %99 = vrot.lane.b32.xlu0 %v84, 96
    %v100 = vpop.permute.xlu0 %99
    %101 = vrot.lane.b32.xlu0 %v87, 96
    %v102 = vpop.permute.xlu0 %101
    %vm103 = vcmask 261120
    %v105 = vsel %vm103, %v89, 0
    %v108 = vsel %vm103, %v90, 0
    %v111 = vsel %vm103, %v91, 0
    %v114 = vsel %vm103, %v92, 0
    %v117 = vsel %vm103, %v93, 0
    %v120 = vsel %vm103, %v94, 0
    %v123 = vsel %vm103, %v95, 0
    %v126 = vsel %vm103, %v96, 0
    %v128 = vsel %vm103, %v100, 0
    %v130 = vsel %vm103, %v102, 0
    %132 = vmatpush.xpose.msra.mxu0 0.0
    %133 = vmatpush.xpose.msra.mxu0 0.0
    %134 = vmatpush.xpose.msra.mxu0 0.0
    %135 = vmatpush.xpose.msra.mxu0 0.0
    %136 = vmatpush.xpose.msra.mxu0 0.0
    %137 = vmatpush.xpose.msra.mxu0 0.0
    %138 = vmatpush.xpose.msra.mxu0 0.0
    %139 = vmatpush.xpose.msra.mxu0 0.0
    %140 = vmatpush.xpose.msra.mxu0 0.0
    %141 = vmatpush.xpose.msra.mxu0 0.0
    %142 = vmatpush.xpose.msra.mxu0 0.0
    %143 = vmatpush.xpose.msra.mxu0 0.0
    %144 = vmatpush.xpose.msra.mxu0 0.0
    %145 = vmatpush.xpose.msra.mxu0 0.0
    %146 = vmatpush.xpose.msra.mxu0 %v130
    %147 = vmatpush.xpose.msra.mxu0 %v128
    %148 = vmatmul.f32.gmra.mxu0 %v105
    %v149 = vpop.f32.mrf.mxu0
    %v150 = vadd.f32 %v50, %v149
    %151 = vmatmul.f32.gmra.mxu0 %v108
    %v152 = vpop.f32.mrf.mxu0
    %v153 = vadd.f32 %v51, %v152
    %154 = vmatmul.f32.gmra.mxu0 %v111
    %v155 = vpop.f32.mrf.mxu0
    %v156 = vadd.f32 %v52, %v155
    %157 = vmatmul.f32.gmra.mxu0 %v114
    %v158 = vpop.f32.mrf.mxu0
    %v159 = vadd.f32 %v53, %v158
    %160 = vmatmul.f32.gmra.mxu0 %v117
    %v161 = vpop.f32.mrf.mxu0
    %v162 = vadd.f32 %v54, %v161
    %163 = vmatmul.f32.gmra.mxu0 %v120
    %v164 = vpop.f32.mrf.mxu0
    %v165 = vadd.f32 %v55, %v164
    %166 = vmatmul.f32.gmra.mxu0 %v123
    %v167 = vpop.f32.mrf.mxu0
    %v168 = vadd.f32 %v56, %v167
    %169 = vmatmul.f32.gmra.mxu0 %v126
    %v170 = vpop.f32.mrf.mxu0
    %v171 = vadd.f32 %v57, %v170
    %172 = vdwg.mxu0
    %vm173 = vcmask 130048
    %v174 = vsel %vm173, %v150, -inf
    %175 = vmax.xlane.f32.xlu0 %v174
    %v176 = vpop.xlane.xlu0 %175
    %v177 = vsel %vm173, %v153, -inf
    %178 = vmax.xlane.f32.xlu0 %v177
    %v179 = vpop.xlane.xlu0 %178
    %v180 = vsel %vm173, %v156, -inf
    %181 = vmax.xlane.f32.xlu0 %v180
    %v182 = vpop.xlane.xlu0 %181
    %v183 = vsel %vm173, %v159, -inf
    %184 = vmax.xlane.f32.xlu0 %v183
    %v185 = vpop.xlane.xlu0 %184
    %v186 = vsel %vm173, %v162, -inf
    %187 = vmax.xlane.f32.xlu0 %v186
    %v188 = vpop.xlane.xlu0 %187
    %v189 = vsel %vm173, %v165, -inf
    %190 = vmax.xlane.f32.xlu0 %v189
    %v191 = vpop.xlane.xlu0 %190
    %v192 = vsel %vm173, %v168, -inf
    %193 = vmax.xlane.f32.xlu0 %v192
    %v194 = vpop.xlane.xlu0 %193
    %v195 = vsel %vm173, %v171, -inf
    %196 = vmax.xlane.f32.xlu0 %v195
    %v197 = vpop.xlane.xlu0 %196
    %v198 = vsub.f32 %v150, %v176
    %v199 = vsub.f32 %v153, %v179
    %v200 = vsub.f32 %v156, %v182
    %v201 = vsub.f32 %v159, %v185
    %v202 = vsub.f32 %v162, %v188
    %v203 = vsub.f32 %v165, %v191
    %v204 = vsub.f32 %v168, %v194
    %v205 = vsub.f32 %v171, %v197
    %v206 = vmul.f32 %v198, 1.442695
    %v207 = vpow.pop %v206
    %v208 = vmul.f32 %v199, 1.442695
    %v209 = vpow.pop %v208
    %v210 = vmul.f32 %v200, 1.442695
    %v211 = vpow.pop %v210
    %v212 = vmul.f32 %v201, 1.442695
    %v213 = vpow.pop %v212
    %v214 = vmul.f32 %v202, 1.442695
    %v215 = vpow.pop %v214
    %v216 = vmul.f32 %v203, 1.442695
    %v217 = vpow.pop %v216
    %v218 = vmul.f32 %v204, 1.442695
    %v219 = vpow.pop %v218
    %v220 = vmul.f32 %v205, 1.442695
    %v221 = vpow.pop %v220
    %v222 = vsel %vm173, %v207, 0.0
    %223 = vadd.xlane.f32.xlu0 %v222
    %v224 = vpop.xlane.xlu0 %223
    %v225 = vsel %vm173, %v209, 0.0
    %226 = vadd.xlane.f32.xlu0 %v225
    %v227 = vpop.xlane.xlu0 %226
    %v228 = vsel %vm173, %v211, 0.0
    %229 = vadd.xlane.f32.xlu0 %v228
    %v230 = vpop.xlane.xlu0 %229
    %v231 = vsel %vm173, %v213, 0.0
    %232 = vadd.xlane.f32.xlu0 %v231
    %v233 = vpop.xlane.xlu0 %232
    %v234 = vsel %vm173, %v215, 0.0
    %235 = vadd.xlane.f32.xlu0 %v234
    %v236 = vpop.xlane.xlu0 %235
    %v237 = vsel %vm173, %v217, 0.0
    %238 = vadd.xlane.f32.xlu0 %v237
    %v239 = vpop.xlane.xlu0 %238
    %v240 = vsel %vm173, %v219, 0.0
    %241 = vadd.xlane.f32.xlu0 %v240
    %v242 = vpop.xlane.xlu0 %241
    %v243 = vsel %vm173, %v221, 0.0
    %244 = vadd.xlane.f32.xlu0 %v243
    %v245 = vpop.xlane.xlu0 %244
    %v246 = vrcp.pop %v224
    %v247 = vmul.f32 %v224, %v246
    %v248 = vsub.f32 1.0, %v247
    %v249 = vmul.f32 %v246, %v248
    %v250 = vadd.f32 %v246, %v249
    %vm251 = vweird.f32 %v224
    %vm252 = vweird.f32 %v246
    %vm253 = vmor %vm251, %vm252
    %v254 = vsel %vm253, %v246, %v250
    %v255 = vand.u32 2147483647, %v224
    %vm256 = vcmp.eq.f32.partialorder %v255, 8.507059e+37
    %v257 = vand.u32 %v224, 2147483648
    %v258 = vor.u32 1.1754944e-38, %v257
    %v259 = vsel %vm256, %v258, %v254
    %v260 = vmul.f32 %v207, %v259
    %v261 = vrcp.pop %v227
    %v262 = vmul.f32 %v227, %v261
    %v263 = vsub.f32 1.0, %v262
    %v264 = vmul.f32 %v261, %v263
    %v265 = vadd.f32 %v261, %v264
    %vm266 = vweird.f32 %v227
    %vm267 = vweird.f32 %v261
    %vm268 = vmor %vm266, %vm267
    %v269 = vsel %vm268, %v261, %v265
    %v270 = vand.u32 2147483647, %v227
    %vm271 = vcmp.eq.f32.partialorder %v270, 8.507059e+37
    %v272 = vand.u32 %v227, 2147483648
    %v273 = vor.u32 1.1754944e-38, %v272
    %v274 = vsel %vm271, %v273, %v269
    %v275 = vmul.f32 %v209, %v274
    %v276 = vrcp.pop %v230
    %v277 = vmul.f32 %v230, %v276
    %v278 = vsub.f32 1.0, %v277
    %v279 = vmul.f32 %v276, %v278
    %v280 = vadd.f32 %v276, %v279
    %vm281 = vweird.f32 %v230
    %vm282 = vweird.f32 %v276
    %vm283 = vmor %vm281, %vm282
    %v284 = vsel %vm283, %v276, %v280
    %v285 = vand.u32 2147483647, %v230
    %vm286 = vcmp.eq.f32.partialorder %v285, 8.507059e+37
    %v287 = vand.u32 %v230, 2147483648
    %v288 = vor.u32 1.1754944e-38, %v287
    %v289 = vsel %vm286, %v288, %v284
    %v290 = vmul.f32 %v211, %v289
    %v291 = vrcp.pop %v233
    %v292 = vmul.f32 %v233, %v291
    %v293 = vsub.f32 1.0, %v292
    %v294 = vmul.f32 %v291, %v293
    %v295 = vadd.f32 %v291, %v294
    %vm296 = vweird.f32 %v233
    %vm297 = vweird.f32 %v291
    %vm298 = vmor %vm296, %vm297
    %v299 = vsel %vm298, %v291, %v295
    %v300 = vand.u32 2147483647, %v233
    %vm301 = vcmp.eq.f32.partialorder %v300, 8.507059e+37
    %v302 = vand.u32 %v233, 2147483648
    %v303 = vor.u32 1.1754944e-38, %v302
    %v304 = vsel %vm301, %v303, %v299
    %v305 = vmul.f32 %v213, %v304
    %v306 = vrcp.pop %v236
    %v307 = vmul.f32 %v236, %v306
    %v308 = vsub.f32 1.0, %v307
    %v309 = vmul.f32 %v306, %v308
    %v310 = vadd.f32 %v306, %v309
    %vm311 = vweird.f32 %v236
    %vm312 = vweird.f32 %v306
    %vm313 = vmor %vm311, %vm312
    %v314 = vsel %vm313, %v306, %v310
    %v315 = vand.u32 2147483647, %v236
    %vm316 = vcmp.eq.f32.partialorder %v315, 8.507059e+37
    %v317 = vand.u32 %v236, 2147483648
    %v318 = vor.u32 1.1754944e-38, %v317
    %v319 = vsel %vm316, %v318, %v314
    %v320 = vmul.f32 %v215, %v319
    %v321 = vrcp.pop %v239
    %v322 = vmul.f32 %v239, %v321
    %v323 = vsub.f32 1.0, %v322
    %v324 = vmul.f32 %v321, %v323
    %v325 = vadd.f32 %v321, %v324
    %vm326 = vweird.f32 %v239
    %vm327 = vweird.f32 %v321
    %vm328 = vmor %vm326, %vm327
    %v329 = vsel %vm328, %v321, %v325
    %v330 = vand.u32 2147483647, %v239
    %vm331 = vcmp.eq.f32.partialorder %v330, 8.507059e+37
    %v332 = vand.u32 %v239, 2147483648
    %v333 = vor.u32 1.1754944e-38, %v332
    %v334 = vsel %vm331, %v333, %v329
    %v335 = vmul.f32 %v217, %v334
    %v336 = vrcp.pop %v242
    %v337 = vmul.f32 %v242, %v336
    %v338 = vsub.f32 1.0, %v337
    %v339 = vmul.f32 %v336, %v338
    %v340 = vadd.f32 %v336, %v339
    %vm341 = vweird.f32 %v242
    %vm342 = vweird.f32 %v336
    %vm343 = vmor %vm341, %vm342
    %v344 = vsel %vm343, %v336, %v340
    %v345 = vand.u32 2147483647, %v242
    %vm346 = vcmp.eq.f32.partialorder %v345, 8.507059e+37
    %v347 = vand.u32 %v242, 2147483648
    %v348 = vor.u32 1.1754944e-38, %v347
    %v349 = vsel %vm346, %v348, %v344
    %v350 = vmul.f32 %v219, %v349
    %v351 = vrcp.pop %v245
    %v352 = vmul.f32 %v245, %v351
    %v353 = vsub.f32 1.0, %v352
    %v354 = vmul.f32 %v351, %v353
    %v355 = vadd.f32 %v351, %v354
    %vm356 = vweird.f32 %v245
    %vm357 = vweird.f32 %v351
    %vm358 = vmor %vm356, %vm357
    %v359 = vsel %vm358, %v351, %v355
    %v360 = vand.u32 2147483647, %v245
    %vm361 = vcmp.eq.f32.partialorder %v360, 8.507059e+37
    %v362 = vand.u32 %v245, 2147483648
    %v363 = vor.u32 1.1754944e-38, %v362
    %v364 = vsel %vm361, %v363, %v359
    %v365 = vmul.f32 %v221, %v364
    %366 = vrot.lane.b32.xlu0 %v84, 64
    %v367 = vpop.permute.xlu0 %366
    %368 = vrot.lane.b32.xlu0 %v87, 64
    %v369 = vpop.permute.xlu0 %368
    %v373 = vsel %vm173, %v260, 0
    %v376 = vsel %vm173, %v275, 0
    %v379 = vsel %vm173, %v290, 0
    %v382 = vsel %vm173, %v305, 0
    %v385 = vsel %vm173, %v320, 0
    %v388 = vsel %vm173, %v335, 0
    %v391 = vsel %vm173, %v350, 0
    %v394 = vsel %vm173, %v365, 0
    %396 = vmatpush.msra.mxu0 0.0
    %397 = vmatpush.msra.mxu0 0.0
    %398 = vmatpush.msra.mxu0 0.0
    %399 = vmatpush.msra.mxu0 0.0
    %400 = vmatpush.msra.mxu0 0.0
    %401 = vmatpush.msra.mxu0 0.0
    %402 = vmatpush.msra.mxu0 0.0
    %403 = vmatpush.msra.mxu0 0.0
    %404 = vmatpush.msra.mxu0 0.0
    %405 = vmatpush.msra.mxu0 0.0
    %406 = vmatpush.msra.mxu0 0.0
    %407 = vmatpush.msra.mxu0 0.0
    %408 = vmatpush.msra.mxu0 0.0
    %409 = vmatpush.msra.mxu0 0.0
    %410 = vmatpush.msra.mxu0 %v369
    %411 = vmatpush.msra.mxu0 %v367
    %412 = vmatmul.f32.gmra.mxu0 %v373
    %v413 = vpop.f32.mrf.mxu0
    %v414 = vadd.f32 0.0, %v413
    %415 = vmatmul.f32.gmra.mxu0 %v376
    %v416 = vpop.f32.mrf.mxu0
    %v417 = vadd.f32 0.0, %v416
    %418 = vmatmul.f32.gmra.mxu0 %v379
    %v419 = vpop.f32.mrf.mxu0
    %v420 = vadd.f32 0.0, %v419
    %421 = vmatmul.f32.gmra.mxu0 %v382
    %v422 = vpop.f32.mrf.mxu0
    %v423 = vadd.f32 0.0, %v422
    %424 = vmatmul.f32.gmra.mxu0 %v385
    %v425 = vpop.f32.mrf.mxu0
    %v426 = vadd.f32 0.0, %v425
    %427 = vmatmul.f32.gmra.mxu0 %v388
    %v428 = vpop.f32.mrf.mxu0
    %v429 = vadd.f32 0.0, %v428
    %430 = vmatmul.f32.gmra.mxu0 %v391
    %v431 = vpop.f32.mrf.mxu0
    %v432 = vadd.f32 0.0, %v431
    %433 = vmatmul.f32.gmra.mxu0 %v394
    %v434 = vpop.f32.mrf.mxu0
    %v435 = vadd.f32 0.0, %v434
    %436 = vdwg.mxu0
    %v437 = vmul.f32 %v414, %v42
    %v438 = vmul.f32 %v417, %v43
    %v439 = vmul.f32 %v420, %v44
    %v440 = vmul.f32 %v423, %v45
    %v441 = vmul.f32 %v426, %v46
    %v442 = vmul.f32 %v429, %v47
    %v443 = vmul.f32 %v432, %v48
    %v444 = vmul.f32 %v435, %v49
    %v445 = vadd.f32 %v437, %v439
    %v446 = vadd.f32 %v438, %v440
    %v447 = vadd.f32 %v445, %v441
    %v448 = vadd.f32 %v446, %v442
    %v449 = vadd.f32 %v447, %v443
    %v450 = vadd.f32 %v448, %v444
    %v451 = vperm.slane %v58, 0
    %v453 = vsel %vm103, %v449, 0
    %v456 = vsel %vm103, %v450, 0
    %458 = vmatpush.msra.mxu0 0.0
    %459 = vmatpush.msra.mxu0 0.0
    %460 = vmatpush.msra.mxu0 0.0
    %461 = vmatpush.msra.mxu0 0.0
    %462 = vmatpush.msra.mxu0 0.0
    %463 = vmatpush.msra.mxu0 0.0
    %464 = vmatpush.msra.mxu0 0.0
    %465 = vmatpush.msra.mxu0 0.0
    %466 = vmatpush.msra.mxu0 0.0
    %467 = vmatpush.msra.mxu0 0.0
    %468 = vmatpush.msra.mxu0 0.0
    %469 = vmatpush.msra.mxu0 0.0
    %470 = vmatpush.msra.mxu0 %v29
    %471 = vmatpush.msra.mxu0 %v28
    %472 = vmatpush.msra.mxu0 %v27
    %473 = vmatpush.msra.mxu0 %v26
    %474 = vmatmul.f32.gmra.mxu0 %v453
    %v475 = vpop.f32.mrf.mxu0
    %v476 = vadd.f32 %v451, %v475
    %477 = vmatmul.f32.gmra.mxu0 %v456
    %v478 = vpop.f32.mrf.mxu0
    %v479 = vadd.f32 %v451, %v478
    %480 = vdwg.mxu0
    %v481 = vadd.f32 %v476, %v12
    %v482 = vadd.f32 %v479, %v13
    %v483 = vsel %vm103, %v481, 0.0
    %484 = vadd.xlane.f32.xlu0 %v483
    %v485 = vpop.xlane.xlu0 %484
    %v486 = vsel %vm103, %v482, 0.0
    %487 = vadd.xlane.f32.xlu0 %v486
    %v488 = vpop.xlane.xlu0 %487
    %v489 = vrcp.pop 32.0
    %v490 = vmul.f32 32.0, %v489
    %v491 = vsub.f32 1.0, %v490
    %v492 = vmul.f32 %v489, %v491
    %v493 = vadd.f32 %v489, %v492
    %vm494 = vweird.f32 %v489
    %v495 = vsel %vm494, %v489, %v493
    %v496 = vmul.f32 %v485, %v495
    %v497 = vmul.f32 %v488, %v495
    %v498 = vsub.f32 %v481, %v496
    %v499 = vsub.f32 %v482, %v497
    %v500 = vmul.f32 %v498, %v498
    %v501 = vmul.f32 %v499, %v499
    %v502 = vsel %vm103, %v500, 0.0
    %503 = vadd.xlane.f32.xlu0 %v502
    %v504 = vpop.xlane.xlu0 %503
    %v505 = vsel %vm103, %v501, 0.0
    %506 = vadd.xlane.f32.xlu0 %v505
    %v507 = vpop.xlane.xlu0 %506
    %v508 = vmul.f32 %v504, %v495
    %v509 = vmul.f32 %v507, %v495
    %v510 = vadd.f32 %v508, 1e-05
    %v511 = vadd.f32 %v509, 1e-05
    %v512 = vrsqrt.pop %v510
    %v513 = vmul.f32 %v512, %v510
    %v514 = vmul.f32 %v513, %v512
    %v515 = vmul.f32 0.5, %v514
    %v516 = vsub.f32 1.5, %v515
    %v517 = vmul.f32 %v512, %v516
    %vm518 = vweird.f32 %v510
    %vm519 = vweird.f32 %v512
    %vm520 = vmor %vm518, %vm519
    %v521 = vsel %vm520, %v512, %v517
    %v522 = vrsqrt.pop %v511
    %v523 = vmul.f32 %v522, %v511
    %v524 = vmul.f32 %v523, %v522
    %v525 = vmul.f32 0.5, %v524
    %v526 = vsub.f32 1.5, %v525
    %v527 = vmul.f32 %v522, %v526
    %vm528 = vweird.f32 %v511
    %vm529 = vweird.f32 %v522
    %vm530 = vmor %vm528, %vm529
    %v531 = vsel %vm530, %v522, %v527
    %v532 = vmul.f32 %v498, %v521
    %v533 = vmul.f32 %v499, %v531
    %v534 = vperm.slane %v58, 1
    %v535 = vmul.f32 %v532, %v534
    %v536 = vmul.f32 %v533, %v534
    %v537 = vperm.slane %v58, 2
    %v538 = vadd.f32 %v535, %v537
    %v539 = vadd.f32 %v536, %v537
    %v540 = vperm.slane %v58, 3
    %v542 = vsel %vm103, %v538, 0
    %v545 = vsel %vm103, %v539, 0
    %547 = vmatpush.msra.mxu0 0.0
    %548 = vmatpush.msra.mxu0 0.0
    %549 = vmatpush.msra.mxu0 0.0
    %550 = vmatpush.msra.mxu0 0.0
    %551 = vmatpush.msra.mxu0 0.0
    %552 = vmatpush.msra.mxu0 0.0
    %553 = vmatpush.msra.mxu0 0.0
    %554 = vmatpush.msra.mxu0 0.0
    %555 = vmatpush.msra.mxu0 0.0
    %556 = vmatpush.msra.mxu0 0.0
    %557 = vmatpush.msra.mxu0 0.0
    %558 = vmatpush.msra.mxu0 0.0
    %559 = vmatpush.msra.mxu0 %v33
    %560 = vmatpush.msra.mxu0 %v32
    %561 = vmatpush.msra.mxu0 %v31
    %562 = vmatpush.msra.mxu0 %v30
    %563 = vmatmul.f32.gmra.mxu0 %v542
    %v564 = vpop.f32.mrf.mxu0
    %v565 = vadd.f32 %v540, %v564
    %566 = vmatmul.f32.gmra.mxu0 %v545
    %v567 = vpop.f32.mrf.mxu0
    %v568 = vadd.f32 %v540, %v567
    %569 = vdwg.mxu0
    %v570 = vmax.f32 %v565, 0.0
    %v571 = vmax.f32 %v568, 0.0
    %v572 = vperm.slane %v58, 4
    %vm573 = vcmask 523264
    %v575 = vsel %vm573, %v570, 0
    %v578 = vsel %vm573, %v571, 0
    %580 = vmatpush.msra.mxu0 0.0
    %581 = vmatpush.msra.mxu0 0.0
    %582 = vmatpush.msra.mxu0 0.0
    %583 = vmatpush.msra.mxu0 0.0
    %584 = vmatpush.msra.mxu0 0.0
    %585 = vmatpush.msra.mxu0 0.0
    %586 = vmatpush.msra.mxu0 0.0
    %587 = vmatpush.msra.mxu0 0.0
    %588 = vmatpush.msra.mxu0 %v41
    %589 = vmatpush.msra.mxu0 %v40
    %590 = vmatpush.msra.mxu0 %v39
    %591 = vmatpush.msra.mxu0 %v38
    %592 = vmatpush.msra.mxu0 %v37
    %593 = vmatpush.msra.mxu0 %v36
    %594 = vmatpush.msra.mxu0 %v35
    %595 = vmatpush.msra.mxu0 %v34
    %596 = vmatmul.f32.gmra.mxu0 %v575
    %v597 = vpop.f32.mrf.mxu0
    %v598 = vadd.f32 %v572, %v597
    %599 = vmatmul.f32.gmra.mxu0 %v578
    %v600 = vpop.f32.mrf.mxu0
    %v601 = vadd.f32 %v572, %v600
    %602 = vdwg.mxu0
    %v603 = vadd.f32 %v598, %v538
    %v604 = vadd.f32 %v601, %v539
    %v605 = vsel %vm103, %v603, 0.0
    %606 = vadd.xlane.f32.xlu0 %v605
    %v607 = vpop.xlane.xlu0 %606
    %v608 = vsel %vm103, %v604, 0.0
    %609 = vadd.xlane.f32.xlu0 %v608
    %v610 = vpop.xlane.xlu0 %609
    %v611 = vmul.f32 %v607, %v495
    %v612 = vmul.f32 %v610, %v495
    %v613 = vsub.f32 %v603, %v611
    %v614 = vsub.f32 %v604, %v612
    %v615 = vmul.f32 %v613, %v613
    %v616 = vmul.f32 %v614, %v614
    %v617 = vsel %vm103, %v615, 0.0
    %618 = vadd.xlane.f32.xlu0 %v617
    %v619 = vpop.xlane.xlu0 %618
    %v620 = vsel %vm103, %v616, 0.0
    %621 = vadd.xlane.f32.xlu0 %v620
    %v622 = vpop.xlane.xlu0 %621
    %v623 = vmul.f32 %v619, %v495
    %v624 = vmul.f32 %v622, %v495
    %v625 = vadd.f32 %v623, 1e-05
    %v626 = vadd.f32 %v624, 1e-05
    %v627 = vrsqrt.pop %v625
    %v628 = vmul.f32 %v627, %v625
    %v629 = vmul.f32 %v628, %v627
    %v630 = vmul.f32 0.5, %v629
    %v631 = vsub.f32 1.5, %v630
    %v632 = vmul.f32 %v627, %v631
    %vm633 = vweird.f32 %v625
    %vm634 = vweird.f32 %v627
    %vm635 = vmor %vm633, %vm634
    %v636 = vsel %vm635, %v627, %v632
    %v637 = vrsqrt.pop %v626
    %v638 = vmul.f32 %v637, %v626
    %v639 = vmul.f32 %v638, %v637
    %v640 = vmul.f32 0.5, %v639
    %v641 = vsub.f32 1.5, %v640
    %v642 = vmul.f32 %v637, %v641
    %vm643 = vweird.f32 %v626
    %vm644 = vweird.f32 %v637
    %vm645 = vmor %vm643, %vm644
    %v646 = vsel %vm645, %v637, %v642
    %v647 = vmul.f32 %v613, %v636
    %v648 = vmul.f32 %v614, %v646
    %v649 = vperm.slane %v58, 5
    %v650 = vmul.f32 %v647, %v649
    %v651 = vmul.f32 %v648, %v649
    %v652 = vperm.slane %v58, 6
    %v653 = vadd.f32 %v650, %v652
    %v654 = vadd.f32 %v651, %v652
    %655 = vst.msk [vmem:[#allocation2] sm:$0xff] %vm103, %v653
    %656 = vst.msk [vmem:[#allocation2 + $0x8] sm:$0xff] %vm103, %v654
    // Predicated region
    $region10: #{transformer_block.1} parent=1 // pred_check
      _
    $region11: #{transformer_block.1} parent=1 // pred_check_branch
      %658 = sbr.rel (0) target = $region13
    $region12: #{transformer_block.1} parent=1 // pred_region
      %660 = vsyncadd [#allocation3], 0
      %s661 = sshll.u32 [#allocation2], 4
      %s662 = int_to_ptr.vmem [resolvable:$true] %s661
      %s663 = sshll.u32 %s2, 4
      %s664 = int_to_ptr.hbm [resolvable:$true] %s663
      %669 = dma.vmem_to_hbm [thread:$0]  %s662, 256, %s664, [#allocation3], 128, 128, 8
    $region13: #{transformer_block.1} parent=1 // pred_fallthru
      _
    // Predicated region
    $region14: #{transformer_block.1} parent=1 // pred_check
      _
    $region15: #{transformer_block.1} parent=1 // pred_check_branch
      %671 = sbr.rel (0) target = $region17
    $region16: #{transformer_block.1} parent=1 // pred_region
      %673 = dma.done [#allocation3], 256
    $region17: #{transformer_block.1} parent=1 // pred_fallthru
      _
    %674 = vsyncpa [#allocation3], 1

</llo_original>
